<compile_context>
chip_gen: v7x
topology: tpu7x:2x2x1
jax: 0.10.0
libtpu: 0.0.40
codegen_flags: <defaults>
</compile_context>

<pallas_src>
from functools import partial

import jax
import jax.numpy as jnp
import numpy as np
from jax.experimental import pallas as pl
from jax.experimental.pallas import tpu as pltpu

BN_EPS = 1e-5


# ---------------------------------------------------------------------------
# Fused kernel: 1x1 conv (VPU) + ReLU + BatchNorm2d (train stats, one-pass,
# folded FMA) + flatten + Linear(F,256) + ReLU + Linear(256, D2_padded)
# ---------------------------------------------------------------------------
def fused_reward_kernel(x_ref, wc_ref, bc_ref, gamma_ref, beta_ref,
                        w1_ref, b1_ref, w2_ref, b2_ref, o_ref, feat_ref):
    # x_ref:    (N, C_in*P) f32 VMEM   (lanes = [channel-major | pixels], P=H*W)
    # wc_ref:   (C_in, hidden) SMEM ; bc/gamma/beta: (hidden,) SMEM
    # w1_ref:   (hidden*P, 256) bf16 ; w2_ref: (256, D2_pad) bf16
    # b1_ref:   (1, 256) f32 ; b2_ref: (1, D2_pad) f32
    # feat_ref: (N, hidden*P) f32 VMEM scratch (lane-dense flatten buffer)
    n_batch = x_ref.shape[0]
    c_in, hidden = wc_ref.shape
    pix = x_ref.shape[1] // c_in
    inv_cnt = 1.0 / float(n_batch * pix)

    for d in range(hidden):
        # --- 1x1 conv, output channel d: unrolled VPU broadcast-FMA ---------
        acc = wc_ref[0, d] * x_ref[:, pl.ds(0, pix)]                 # (N, P)
        for c in range(1, c_in):
            acc = acc + wc_ref[c, d] * x_ref[:, pl.ds(c * pix, pix)]
        y = jnp.maximum(acc + bc_ref[d], 0.0)                        # bias + ReLU

        # --- BatchNorm2d (training): one-pass biased stats over N*P ---------
        rs = jnp.sum(y, axis=1, keepdims=True)                       # (N, 1)
        rss = jnp.sum(y * y, axis=1, keepdims=True)                  # (N, 1)
        mean = jnp.sum(rs, axis=0, keepdims=True) * inv_cnt          # (1, 1)
        var = jnp.sum(rss, axis=0, keepdims=True) * inv_cnt - mean * mean

        # Folded affine: o = y*scale + shift
        scale = gamma_ref[d] * jax.lax.rsqrt(var + BN_EPS)           # (1, 1)
        shift = beta_ref[d] - mean * scale                           # (1, 1)

        # (c, h, w) flatten order: channel block at lane offset d*P (static).
        feat_ref[:, pl.ds(d * pix, pix)] = y * scale + shift

    # --- MLP: Linear -> ReLU -> Linear (MXU, bf16 in / f32 accumulate) ------
    feat = feat_ref[...].astype(jnp.bfloat16)                        # (N, F)
    h = jnp.dot(feat, w1_ref[...], preferred_element_type=jnp.float32)
    h = jnp.maximum(h + b1_ref[...], 0.0)                            # (N, 256)
    out = jnp.dot(h.astype(jnp.bfloat16), w2_ref[...],
                  preferred_element_type=jnp.float32)                # (N, D2p)
    o_ref[...] = out + b2_ref[...]


def prepare_kernel_params(params):
    """One-time (outside the per-step jit) prep: bf16 weights + 128-lane pad."""
    D2 = params["w2"].shape[1]
    D2p = ((D2 + 127) // 128) * 128
    return {
        "wc": params["wc"], "bc": params["bc"],
        "gamma": params["gamma"], "beta": params["beta"],
        "w1": params["w1"].astype(jnp.bfloat16),
        "b1": params["b1"],
        "w2": jnp.pad(params["w2"], ((0, 0), (0, D2p - D2))).astype(jnp.bfloat16),
        "b2": jnp.pad(params["b2"], ((0, 0), (0, D2p - D2))),
    }


def reward_predictor_forward(x, kp, out_dim):
    """x: (N, C_in, H, W) float32 NCHW; kp: output of prepare_kernel_params."""
    N, C_in, H, W = x.shape
    hidden = kp["wc"].shape[1]
    P = H * W
    F_in = hidden * P
    D1 = kp["w1"].shape[1]
    D2p = kp["w2"].shape[1]

    # Free reshape (row-major contiguous): channel c occupies lanes [c*P, (c+1)*P).
    x2 = x.reshape(N, C_in * P)

    out_p = pl.pallas_call(
        fused_reward_kernel,
        out_shape=jax.ShapeDtypeStruct((N, D2p), jnp.float32),
        grid=(1,),
        in_specs=[
            pl.BlockSpec((N, C_in * P), lambda i: (0, 0)),            # x (VMEM)
            pl.BlockSpec(memory_space=pltpu.MemorySpace.SMEM),        # wc scalars
            pl.BlockSpec(memory_space=pltpu.MemorySpace.SMEM),        # bc
            pl.BlockSpec(memory_space=pltpu.MemorySpace.SMEM),        # gamma
            pl.BlockSpec(memory_space=pltpu.MemorySpace.SMEM),        # beta
            pl.BlockSpec((F_in, D1), lambda i: (0, 0)),               # w1 (bf16)
            pl.BlockSpec((1, D1), lambda i: (0, 0)),                  # b1
            pl.BlockSpec((D1, D2p), lambda i: (0, 0)),                # w2 (bf16, padded)
            pl.BlockSpec((1, D2p), lambda i: (0, 0)),                 # b2 (padded)
        ],
        out_specs=pl.BlockSpec((N, D2p), lambda i: (0, 0)),
        scratch_shapes=[pltpu.VMEM((N, F_in), jnp.float32)],          # feat slab
        compiler_params=pltpu.CompilerParams(
            dimension_semantics=("arbitrary",)),
    )(x2, kp["wc"], kp["bc"], kp["gamma"], kp["beta"],
      kp["w1"], kp["b1"], kp["w2"], kp["b2"])

    return out_p[:, :out_dim]


# ---------------------------------------------------------------------------
# Pure-JAX reference (f32, same math as the PyTorch module) for verification
# ---------------------------------------------------------------------------
def reward_predictor_ref(x, params):
    N, C_in, H, W = x.shape
    wc, bc = params["wc"], params["bc"]
    gamma, beta = params["gamma"], params["beta"]
    hidden = wc.shape[1]
    hp = jax.lax.Precision.HIGHEST
    # conv1x1 + relu
    y = jnp.einsum("nchw,cd->ndhw", x, wc, precision=hp) + bc.reshape(1, hidden, 1, 1)
    y = jnp.maximum(y, 0.0)
    # BatchNorm2d (train): per-channel over (N,H,W), biased var
    mean = jnp.mean(y, axis=(0, 2, 3), keepdims=True)
    var = jnp.mean((y - mean) ** 2, axis=(0, 2, 3), keepdims=True)
    y = (y - mean) / jnp.sqrt(var + BN_EPS)
    y = y * gamma.reshape(1, hidden, 1, 1) + beta.reshape(1, hidden, 1, 1)
    feat = y.reshape(N, hidden * H * W)
    h = jnp.maximum(jnp.dot(feat, params["w1"], precision=hp) + params["b1"], 0.0)
    return jnp.dot(h, params["w2"], precision=hp) + params["b2"]


def make_params(key, input_channels, hidden_size, pixels, limit):
    ks = jax.random.split(key, 8)
    out_dim = 2 * limit + 1
    F_in = pixels * hidden_size
    return {
        # Conv2d 1x1 weight stored as (C_in, hidden) = transposed PyTorch (hidden, C_in, 1, 1)
        "wc": 0.1 * jax.random.normal(ks[0], (input_channels, hidden_size), jnp.float32),
        "bc": 0.1 * jax.random.normal(ks[1], (hidden_size,), jnp.float32),
        # BatchNorm affine params (PyTorch init gamma=1, beta=0; perturbed deterministically)
        "gamma": jnp.ones((hidden_size,), jnp.float32)
        + 0.05 * jax.random.normal(ks[2], (hidden_size,), jnp.float32),
        "beta": 0.05 * jax.random.normal(ks[3], (hidden_size,), jnp.float32),
        # Linear weights stored as (in, out) = transposed PyTorch (out, in)
        "w1": 0.1 * jax.random.normal(ks[4], (F_in, 256), jnp.float32),
        "b1": 0.1 * jax.random.normal(ks[5], (1, 256), jnp.float32),
        "w2": 0.1 * jax.random.normal(ks[6], (256, out_dim), jnp.float32),
        "b2": 0.1 * jax.random.normal(ks[7], (1, out_dim), jnp.float32),
    }


if __name__ == "__main__":
    # Small shapes consistent with the module: 1x1 conv, hidden_size=1,
    # pixels = H*W (=256 here), output dim = 2*limit+1.
    N, C_in, H, W = 2, 4, 16, 16
    hidden_size = 1
    pixels = H * W
    limit = 10                  # output dim = 21 (padded to 128 inside the kernel)
    out_dim = 2 * limit + 1

    key = jax.random.PRNGKey(0)
    kx, kp = jax.random.split(key)
    x = jax.random.normal(kx, (N, C_in, H, W), jnp.float32)
    params = make_params(kp, C_in, hidden_size, pixels, limit)

    # One-time parameter prep (bf16 weights, 128-lane padded head) outside jit.
    kparams = prepare_kernel_params(params)

    fwd = jax.jit(partial(reward_predictor_forward, out_dim=out_dim))
    out = jax.block_until_ready(fwd(x, kparams))

    ref = reward_predictor_ref(x, params)
    # Tolerance relaxed to cover bf16 MXU inputs (f32 reference), per review.
    np.testing.assert_allclose(np.asarray(out), np.asarray(ref), atol=5e-2, rtol=5e-2)

    assert out.shape == (N, out_dim)
    print("KERNEL_OK")
</pallas_src>

<mosaic_0001>
module attributes {stable_mosaic.version = 11 : i64} {
  func.func @fused_reward_kernel(%arg0: i32, %arg1: memref<2x1024xf32, #tpu.memory_space<vmem>>, %arg2: memref<4x1xf32, #tpu.memory_space<smem>>, %arg3: memref<1xf32, #tpu.memory_space<smem>>, %arg4: memref<1xf32, #tpu.memory_space<smem>>, %arg5: memref<1xf32, #tpu.memory_space<smem>>, %arg6: memref<256x256xbf16, #tpu.memory_space<vmem>>, %arg7: memref<1x256xf32, #tpu.memory_space<vmem>>, %arg8: memref<256x128xbf16, #tpu.memory_space<vmem>>, %arg9: memref<1x128xf32, #tpu.memory_space<vmem>>, %arg10: memref<2x128xf32, #tpu.memory_space<vmem>>, %arg11: memref<2x256xf32, #tpu.memory_space<vmem>>) attributes {dimension_semantics = [#tpu.dimension_semantics<arbitrary>], iteration_bounds = array<i64: 1>, scalar_prefetch = 0 : i64, scratch_operands = 1 : i64, tpu.core_type = #tpu.core_type<tc>, window_params = [{pipeline_mode = #tpu.pipeline_mode<synchronous>, transform_indices = @transform_0, window_bounds = array<i64: 2, 1024>}, {transform_indices = @transform_1, window_bounds = array<i64: 4, 1>}, {transform_indices = @transform_2, window_bounds = array<i64: 1>}, {transform_indices = @transform_3, window_bounds = array<i64: 1>}, {transform_indices = @transform_4, window_bounds = array<i64: 1>}, {pipeline_mode = #tpu.pipeline_mode<synchronous>, transform_indices = @transform_5, window_bounds = array<i64: 256, 256>}, {pipeline_mode = #tpu.pipeline_mode<synchronous>, transform_indices = @transform_6, window_bounds = array<i64: 1, 256>}, {pipeline_mode = #tpu.pipeline_mode<synchronous>, transform_indices = @transform_7, window_bounds = array<i64: 256, 128>}, {pipeline_mode = #tpu.pipeline_mode<synchronous>, transform_indices = @transform_8, window_bounds = array<i64: 1, 128>}, {pipeline_mode = #tpu.pipeline_mode<synchronous>, transform_indices = @transform_9, window_bounds = array<i64: 2, 128>}]} {
    %c0 = arith.constant 0 : index
    %c0_0 = arith.constant 0 : index
    %0 = memref.load %arg2[%c0, %c0_0] : memref<4x1xf32, #tpu.memory_space<smem>>
    %c0_1 = arith.constant 0 : index
    %c0_2 = arith.constant 0 : index
    %1 = vector.load %arg1[%c0_1, %c0_2] : memref<2x1024xf32, #tpu.memory_space<vmem>>, vector<2x256xf32>
    %2 = vector.broadcast %0 : f32 to vector<2x256xf32>
    %3 = arith.mulf %2, %1 : vector<2x256xf32>
    %c1 = arith.constant 1 : index
    %c0_3 = arith.constant 0 : index
    %4 = memref.load %arg2[%c1, %c0_3] : memref<4x1xf32, #tpu.memory_space<smem>>
    %c0_4 = arith.constant 0 : index
    %c256 = arith.constant 256 : index
    %5 = vector.load %arg1[%c0_4, %c256] : memref<2x1024xf32, #tpu.memory_space<vmem>>, vector<2x256xf32>
    %6 = vector.broadcast %4 : f32 to vector<2x256xf32>
    %7 = arith.mulf %6, %5 : vector<2x256xf32>
    %8 = arith.addf %3, %7 : vector<2x256xf32>
    %c2 = arith.constant 2 : index
    %c0_5 = arith.constant 0 : index
    %9 = memref.load %arg2[%c2, %c0_5] : memref<4x1xf32, #tpu.memory_space<smem>>
    %c0_6 = arith.constant 0 : index
    %c512 = arith.constant 512 : index
    %10 = vector.load %arg1[%c0_6, %c512] : memref<2x1024xf32, #tpu.memory_space<vmem>>, vector<2x256xf32>
    %11 = vector.broadcast %9 : f32 to vector<2x256xf32>
    %12 = arith.mulf %11, %10 : vector<2x256xf32>
    %13 = arith.addf %8, %12 : vector<2x256xf32>
    %c3 = arith.constant 3 : index
    %c0_7 = arith.constant 0 : index
    %14 = memref.load %arg2[%c3, %c0_7] : memref<4x1xf32, #tpu.memory_space<smem>>
    %c0_8 = arith.constant 0 : index
    %c768 = arith.constant 768 : index
    %15 = vector.load %arg1[%c0_8, %c768] : memref<2x1024xf32, #tpu.memory_space<vmem>>, vector<2x256xf32>
    %16 = vector.broadcast %14 : f32 to vector<2x256xf32>
    %17 = arith.mulf %16, %15 : vector<2x256xf32>
    %18 = arith.addf %13, %17 : vector<2x256xf32>
    %c0_9 = arith.constant 0 : index
    %19 = memref.load %arg3[%c0_9] : memref<1xf32, #tpu.memory_space<smem>>
    %20 = vector.broadcast %19 : f32 to vector<2x256xf32>
    %21 = arith.addf %18, %20 : vector<2x256xf32>
    %cst = arith.constant 0.000000e+00 : f32
    %22 = vector.broadcast %cst : f32 to vector<2x256xf32>
    %23 = arith.maximumf %21, %22 : vector<2x256xf32>
    %cst_10 = arith.constant dense<0.000000e+00> : vector<2xf32>
    %24 = vector.multi_reduction <add>, %23, %cst_10 [1] : vector<2x256xf32> to vector<2xf32>
    %25 = vector.shape_cast %24 : vector<2xf32> to vector<2x1xf32>
    %26 = arith.mulf %23, %23 : vector<2x256xf32>
    %cst_11 = arith.constant dense<0.000000e+00> : vector<2xf32>
    %27 = vector.multi_reduction <add>, %26, %cst_11 [1] : vector<2x256xf32> to vector<2xf32>
    %28 = vector.shape_cast %27 : vector<2xf32> to vector<2x1xf32>
    %cst_12 = arith.constant dense<0.000000e+00> : vector<1xf32>
    %29 = vector.multi_reduction <add>, %25, %cst_12 [0] : vector<2x1xf32> to vector<1xf32>
    %30 = vector.shape_cast %29 : vector<1xf32> to vector<1x1xf32>
    %cst_13 = arith.constant 0.001953125 : f32
    %31 = vector.broadcast %cst_13 : f32 to vector<1x1xf32>
    %32 = arith.mulf %30, %31 : vector<1x1xf32>
    %cst_14 = arith.constant dense<0.000000e+00> : vector<1xf32>
    %33 = vector.multi_reduction <add>, %28, %cst_14 [0] : vector<2x1xf32> to vector<1xf32>
    %34 = vector.shape_cast %33 : vector<1xf32> to vector<1x1xf32>
    %cst_15 = arith.constant 0.001953125 : f32
    %35 = vector.broadcast %cst_15 : f32 to vector<1x1xf32>
    %36 = arith.mulf %34, %35 : vector<1x1xf32>
    %37 = arith.mulf %32, %32 : vector<1x1xf32>
    %38 = arith.subf %36, %37 : vector<1x1xf32>
    %c0_16 = arith.constant 0 : index
    %39 = memref.load %arg4[%c0_16] : memref<1xf32, #tpu.memory_space<smem>>
    %cst_17 = arith.constant 9.99999974E-6 : f32
    %40 = vector.broadcast %cst_17 : f32 to vector<1x1xf32>
    %41 = arith.addf %38, %40 : vector<1x1xf32>
    %42 = math.rsqrt %41 : vector<1x1xf32>
    %43 = vector.broadcast %39 : f32 to vector<1x1xf32>
    %44 = arith.mulf %43, %42 : vector<1x1xf32>
    %c0_18 = arith.constant 0 : index
    %45 = memref.load %arg5[%c0_18] : memref<1xf32, #tpu.memory_space<smem>>
    %46 = arith.mulf %32, %44 : vector<1x1xf32>
    %47 = vector.broadcast %45 : f32 to vector<1x1xf32>
    %48 = arith.subf %47, %46 : vector<1x1xf32>
    %49 = vector.broadcast %44 : vector<1x1xf32> to vector<2x256xf32>
    %50 = arith.mulf %23, %49 : vector<2x256xf32>
    %51 = vector.broadcast %48 : vector<1x1xf32> to vector<2x256xf32>
    %52 = arith.addf %50, %51 : vector<2x256xf32>
    %c0_19 = arith.constant 0 : index
    %c0_20 = arith.constant 0 : index
    %53 = vector.load %arg11[%c0_19, %c0_20] : memref<2x256xf32, #tpu.memory_space<vmem>>, vector<2x256xf32>
    tpu.vector_store %arg11[%c0_19, %c0_20], %52 {strides = array<i32>} : memref<2x256xf32, #tpu.memory_space<vmem>>, vector<2x256xf32>,
    %c0_21 = arith.constant 0 : index
    %c0_22 = arith.constant 0 : index
    %54 = vector.load %arg11[%c0_21, %c0_22] : memref<2x256xf32, #tpu.memory_space<vmem>>, vector<2x256xf32>
    %55 = arith.truncf %54 : vector<2x256xf32> to vector<2x256xbf16>
    %c0_23 = arith.constant 0 : index
    %c0_24 = arith.constant 0 : index
    %56 = vector.load %arg6[%c0_23, %c0_24] : memref<256x256xbf16, #tpu.memory_space<vmem>>, vector<256x256xbf16>
    %cst_25 = arith.constant dense<0.000000e+00> : vector<2x256xf32>
    %57 = tpu.matmul %55, %56, %cst_25 {dimension_numbers = #tpu.dot_dimension_numbers<[1], [0], [0], [1], [0, 0, 1, 1], [], []>} : vector<2x256xbf16>, vector<256x256xbf16>, vector<2x256xf32> -> vector<2x256xf32>
    %c0_26 = arith.constant 0 : index
    %c0_27 = arith.constant 0 : index
    %58 = vector.load %arg7[%c0_26, %c0_27] : memref<1x256xf32, #tpu.memory_space<vmem>>, vector<1x256xf32>
    %59 = vector.broadcast %58 : vector<1x256xf32> to vector<2x256xf32>
    %60 = arith.addf %57, %59 : vector<2x256xf32>
    %cst_28 = arith.constant 0.000000e+00 : f32
    %61 = vector.broadcast %cst_28 : f32 to vector<2x256xf32>
    %62 = arith.maximumf %60, %61 : vector<2x256xf32>
    %63 = arith.truncf %62 : vector<2x256xf32> to vector<2x256xbf16>
    %c0_29 = arith.constant 0 : index
    %c0_30 = arith.constant 0 : index
    %64 = vector.load %arg8[%c0_29, %c0_30] : memref<256x128xbf16, #tpu.memory_space<vmem>>, vector<256x128xbf16>
    %cst_31 = arith.constant dense<0.000000e+00> : vector<2x128xf32>
    %65 = tpu.matmul %63, %64, %cst_31 {dimension_numbers = #tpu.dot_dimension_numbers<[1], [0], [0], [1], [0, 0, 1, 1], [], []>} : vector<2x256xbf16>, vector<256x128xbf16>, vector<2x128xf32> -> vector<2x128xf32>
    %c0_32 = arith.constant 0 : index
    %c0_33 = arith.constant 0 : index
    %66 = vector.load %arg9[%c0_32, %c0_33] : memref<1x128xf32, #tpu.memory_space<vmem>>, vector<1x128xf32>
    %67 = vector.broadcast %66 : vector<1x128xf32> to vector<2x128xf32>
    %68 = arith.addf %65, %67 : vector<2x128xf32>
    %c0_34 = arith.constant 0 : index
    %c0_35 = arith.constant 0 : index
    %69 = vector.load %arg10[%c0_34, %c0_35] : memref<2x128xf32, #tpu.memory_space<vmem>>, vector<2x128xf32>
    tpu.vector_store %arg10[%c0_34, %c0_35], %68 {strides = array<i32>} : memref<2x128xf32, #tpu.memory_space<vmem>>, vector<2x128xf32>,
    return
  }
  func.func @transform_0(%arg0: i32) -> (i32, i32) {
    %c0_i32 = arith.constant 0 : i32
    %c0_i32_0 = arith.constant 0 : i32
    %c0_i32_1 = arith.constant 0 : i32
    return %c0_i32, %c0_i32_0 : i32, i32
  }
  func.func @transform_1(%arg0: i32) -> (i32, i32) {
    %c0_i32 = arith.constant 0 : i32
    %c0_i32_0 = arith.constant 0 : i32
    %c0_i32_1 = arith.constant 0 : i32
    return %c0_i32, %c0_i32_0 : i32, i32
  }
  func.func @transform_2(%arg0: i32) -> i32 {
    %c0_i32 = arith.constant 0 : i32
    %c0_i32_0 = arith.constant 0 : i32
    return %c0_i32 : i32
  }
  func.func @transform_3(%arg0: i32) -> i32 {
    %c0_i32 = arith.constant 0 : i32
    %c0_i32_0 = arith.constant 0 : i32
    return %c0_i32 : i32
  }
  func.func @transform_4(%arg0: i32) -> i32 {
    %c0_i32 = arith.constant 0 : i32
    %c0_i32_0 = arith.constant 0 : i32
    return %c0_i32 : i32
  }
  func.func @transform_5(%arg0: i32) -> (i32, i32) {
    %c0_i32 = arith.constant 0 : i32
    %c0_i32_0 = arith.constant 0 : i32
    %c0_i32_1 = arith.constant 0 : i32
    return %c0_i32, %c0_i32_0 : i32, i32
  }
  func.func @transform_6(%arg0: i32) -> (i32, i32) {
    %c0_i32 = arith.constant 0 : i32
    %c0_i32_0 = arith.constant 0 : i32
    %c0_i32_1 = arith.constant 0 : i32
    return %c0_i32, %c0_i32_0 : i32, i32
  }
  func.func @transform_7(%arg0: i32) -> (i32, i32) {
    %c0_i32 = arith.constant 0 : i32
    %c0_i32_0 = arith.constant 0 : i32
    %c0_i32_1 = arith.constant 0 : i32
    return %c0_i32, %c0_i32_0 : i32, i32
  }
  func.func @transform_8(%arg0: i32) -> (i32, i32) {
    %c0_i32 = arith.constant 0 : i32
    %c0_i32_0 = arith.constant 0 : i32
    %c0_i32_1 = arith.constant 0 : i32
    return %c0_i32, %c0_i32_0 : i32, i32
  }
  func.func @transform_9(%arg0: i32) -> (i32, i32) {
    %c0_i32 = arith.constant 0 : i32
    %c0_i32_0 = arith.constant 0 : i32
    %c0_i32_1 = arith.constant 0 : i32
    return %c0_i32, %c0_i32_0 : i32, i32
  }
}

</mosaic_0001>

<llo_original>
// kernel: reward_predictor_forward.1
$region0: #{reward_predictor_forward.1}
  #allocation0 [shape = 'u32[]', space=smem, size = 0x4, offset = 0x4, fixed_abs, tag = 'smem constant byte address 0x4 - core index']
  #allocation1 [shape = 'u32[144,128]{1,0:T(1,128)}', space=vmem, size = 0x12000, scoped, tag = 'internal scratch']
  #allocation2 [shape = 'f32[2,256]{1,0:T(2,128)}', space=vmem, size = 0x800, scoped, tag = 'scratch operand']
  #allocation3 [shape = 'f32[1]{0:T(128)S(6)}', space=smem, size = 0x200, scoped, tag = 'scoped memory for reward_predictor_forward.1']
  #allocation4 [shape = 'f32[1]{0:T(128)S(6)}', space=smem, size = 0x200, scoped, tag = 'scoped memory for reward_predictor_forward.1']
  #allocation5 [shape = 'f32[1]{0:T(128)S(6)}', space=smem, size = 0x200, scoped, tag = 'scoped memory for reward_predictor_forward.1']
  %s0 = inlined_call_operand.vmem [shape: f32[2,1024], index: 0, kind: input, shape index: {}]
  %s1 = inlined_call_operand.vmem [shape: f32[4,1], index: 1, kind: input, shape index: {}]
  %s2 = inlined_call_operand.<no memory space> [shape: f32[1], index: 2, kind: input, shape index: {}]
  %s3 = inlined_call_operand.<no memory space> [shape: f32[1], index: 3, kind: input, shape index: {}]
  %s4 = inlined_call_operand.<no memory space> [shape: f32[1], index: 4, kind: input, shape index: {}]
  %s5 = inlined_call_operand.hbm [shape: bf16[256,256], index: 5, kind: input, shape index: {}]
  %s6 = inlined_call_operand.vmem [shape: f32[1,256], index: 6, kind: input, shape index: {}]
  %s7 = inlined_call_operand.vmem [shape: bf16[256,128], index: 7, kind: input, shape index: {}]
  %s8 = inlined_call_operand.vmem [shape: f32[1,128], index: 8, kind: input, shape index: {}]
  %s9 = inlined_call_operand.hbm [shape: f32[2,128], index: 9, kind: output, shape index: {}]
  %s10 = sld [smem:[#allocation0]]
  $region54: #{reward_predictor_forward.1} parent=0
    _
  %s12 = ssub.s32 1, %s10
  %s13 = scalar_select 0, %s12, %s10
  %14 = sst [smem:[#allocation3]] %s2
  %15 = sst [smem:[#allocation4]] %s3
  %16 = sst [smem:[#allocation5]] %s4
  $region1: #{reward_predictor_forward.1} parent=0
    #allocation6 [shape = 'u8[2048]{0}', space=smem, size = 0x800, scoped, tag = 'input window, operand 1, single buffered']
    #allocation7 [shape = 's32[1]{0}', space=sflag, size = 0x4, scoped, tag = 'scoped memory for reward_predictor_forward.1']
    #allocation8 [shape = 's32[1]{0}', space=sflag, size = 0x4, scoped, tag = 'scoped memory for reward_predictor_forward.1']
    #allocation9 [shape = 's32[1]{0}', space=sflag, size = 0x4, scoped, tag = 'scoped memory for reward_predictor_forward.1']
    #allocation10 [shape = 'u8[131072]{0}', space=vmem, size = 0x20000, scoped, tag = 'input window, operand 5, single buffered']
    #allocation11 [shape = 'u8[1024]{0}', space=vmem, size = 0x400, scoped, tag = 'output window, operand 0, single buffered']
    %17 = vsyncpa [#allocation9], 0
    %18 = vsyncpa [#allocation7], 0
    %19 = vsyncpa [#allocation8], 0
    // Predicated region
    $region2: #{reward_predictor_forward.1} parent=1 // pred_check
      _
    $region3: #{reward_predictor_forward.1} parent=1 // pred_check_branch
      %21 = sbr.rel (0) target = $region5
    $region4: #{reward_predictor_forward.1} parent=1 // pred_region
      _
    $region5: #{reward_predictor_forward.1} parent=1 // pred_fallthru
      _
    // Predicated region
    $region6: #{reward_predictor_forward.1} parent=1 // pred_check
      _
    $region7: #{reward_predictor_forward.1} parent=1 // pred_check_branch
      %23 = sbr.rel (0) target = $region9
    $region8: #{reward_predictor_forward.1} parent=1 // pred_region
      %s25 = ssub.s32 64, 64
      %26 = vsyncadd [#allocation9], %s25
      %s28 = sshll.u32 %s1, 4
      %s29 = int_to_ptr.vmem [resolvable:$true] %s28
      %31 = dma.vmem_to_smem %s29, 64, [#allocation6], [#allocation9]
    $region9: #{reward_predictor_forward.1} parent=1 // pred_fallthru
      _
    // Predicated region
    $region10: #{reward_predictor_forward.1} parent=1 // pred_check
      _
    $region11: #{reward_predictor_forward.1} parent=1 // pred_check_branch
      %33 = sbr.rel (0) target = $region13
    $region12: #{reward_predictor_forward.1} parent=1 // pred_region
      _
    $region13: #{reward_predictor_forward.1} parent=1 // pred_fallthru
      _
    // Predicated region
    $region14: #{reward_predictor_forward.1} parent=1 // pred_check
      _
    $region15: #{reward_predictor_forward.1} parent=1 // pred_check_branch
      %35 = sbr.rel (0) target = $region17
    $region16: #{reward_predictor_forward.1} parent=1 // pred_region
      _
    $region17: #{reward_predictor_forward.1} parent=1 // pred_fallthru
      _
    // Predicated region
    $region18: #{reward_predictor_forward.1} parent=1 // pred_check
      _
    $region19: #{reward_predictor_forward.1} parent=1 // pred_check_branch
      %37 = sbr.rel (0) target = $region21
    $region20: #{reward_predictor_forward.1} parent=1 // pred_region
      _
    $region21: #{reward_predictor_forward.1} parent=1 // pred_fallthru
      _
    // Predicated region
    $region22: #{reward_predictor_forward.1} parent=1 // pred_check
      _
    $region23: #{reward_predictor_forward.1} parent=1 // pred_check_branch
      %39 = sbr.rel (0) target = $region25
    $region24: #{reward_predictor_forward.1} parent=1 // pred_region
      %s41 = ssub.s32 4096, 4096
      %42 = vsyncadd [#allocation7], %s41
      %s43 = sshll.u32 [#allocation10], 4
      %s44 = int_to_ptr.vmem [resolvable:$true] %s43
      %49 = dma.hbm_to_vmem [thread:$0]  %s5, 4096, %s44, [#allocation7], 128, 128, 8
    $region25: #{reward_predictor_forward.1} parent=1 // pred_fallthru
      _
    // Predicated region
    $region26: #{reward_predictor_forward.1} parent=1 // pred_check
      _
    $region27: #{reward_predictor_forward.1} parent=1 // pred_check_branch
      %51 = sbr.rel (0) target = $region29
    $region28: #{reward_predictor_forward.1} parent=1 // pred_region
      _
    $region29: #{reward_predictor_forward.1} parent=1 // pred_fallthru
      _
    // Predicated region
    $region30: #{reward_predictor_forward.1} parent=1 // pred_check
      _
    $region31: #{reward_predictor_forward.1} parent=1 // pred_check_branch
      %53 = sbr.rel (0) target = $region33
    $region32: #{reward_predictor_forward.1} parent=1 // pred_region
      _
    $region33: #{reward_predictor_forward.1} parent=1 // pred_fallthru
      _
    // Predicated region
    $region34: #{reward_predictor_forward.1} parent=1 // pred_check
      _
    $region35: #{reward_predictor_forward.1} parent=1 // pred_check_branch
      %55 = sbr.rel (0) target = $region37
    $region36: #{reward_predictor_forward.1} parent=1 // pred_region
      _
    $region37: #{reward_predictor_forward.1} parent=1 // pred_fallthru
      _
    // Predicated region
    $region38: #{reward_predictor_forward.1} parent=1 // pred_check
      _
    $region39: #{reward_predictor_forward.1} parent=1 // pred_check_branch
      %57 = sbr.rel (0) target = $region41
    $region40: #{reward_predictor_forward.1} parent=1 // pred_region
      %58 = dma.done [#allocation9], 64
    $region41: #{reward_predictor_forward.1} parent=1 // pred_fallthru
      _
    // Predicated region
    $region42: #{reward_predictor_forward.1} parent=1 // pred_check
      _
    $region43: #{reward_predictor_forward.1} parent=1 // pred_check_branch
      %60 = sbr.rel (0) target = $region45
    $region44: #{reward_predictor_forward.1} parent=1 // pred_region
      %61 = dma.done [#allocation7], 4096
    $region45: #{reward_predictor_forward.1} parent=1 // pred_fallthru
      _
    %62 = sfence
    %s64 = sld [smem:[#allocation6]]
    %v65 = vld [vmem:[%s0] sm:$0xf]
    %v66 = vstv %s64
    %v67 = vmul.f32 %v66, %v65
    %s68 = sld [smem:[#allocation6 + $0x80]]
    %v69 = vld [vmem:[%s0 + $0x4] sm:$0xf]
    %v70 = vstv %s68
    %v71 = vmul.f32 %v70, %v69
    %v72 = vadd.f32 %v67, %v71
    %s73 = sld [smem:[#allocation6 + $0x100]]
    %v74 = vld [vmem:[%s0 + $0x8] sm:$0xf]
    %v75 = vstv %s73
    %v76 = vmul.f32 %v75, %v74
    %v77 = vadd.f32 %v72, %v76
    %s78 = sld [smem:[#allocation6 + $0x180]]
    %v79 = vld [vmem:[%s0 + $0xc] sm:$0xf]
    %v80 = vstv %s78
    %v81 = vmul.f32 %v80, %v79
    %v82 = vadd.f32 %v77, %v81
    %s83 = sld [smem:[#allocation3]]
    %v84 = vstv %s83
    %v85 = vadd.f32 %v82, %v84
    %v86 = vmax.f32 %v85, 0.0
    %v89 = vunpack.c.l.s4 1983009808
    %v90 = vunpack.c.0.s8 %v89
    %v91 = vlaneseq
    %v92 = vshrl.u32 %v91, 7
    %v93 = vsub.s32 %v90, %v92
    %v94 = vrot.slane %v86, %v93
    %v95 = vcombine.high %v94, %v94
    %vm98 = vcmask 1041408
    %v99 = vsel %vm98, %v94, 0.0
    %v100 = vsel %vm98, %v95, 0.0
    %v101 = vadd.f32 %v99, %v100
    %102 = vadd.xlane.f32.xlu0 %v101
    %v103 = vpop.xlane.xlu0 %102
    %v104 = vmul.f32 %v86, %v86
    %v107 = vunpack.c.l.s4 1983009808
    %v108 = vunpack.c.0.s8 %v107
    %v109 = vlaneseq
    %v110 = vshrl.u32 %v109, 7
    %v111 = vsub.s32 %v108, %v110
    %v112 = vrot.slane %v104, %v111
    %v113 = vcombine.high %v112, %v112
    %v116 = vsel %vm98, %v112, 0.0
    %v117 = vsel %vm98, %v113, 0.0
    %v118 = vadd.f32 %v116, %v117
    %119 = vadd.xlane.f32.xlu0 %v118
    %v120 = vpop.xlane.xlu0 %119
    %v121 = vsel %vm98, %v103, 0.0
    %v122 = vrot.slane %v121, 4
    %v123 = vadd.f32 %v121, %v122
    %v124 = vrot.slane %v123, 2
    %v125 = vadd.f32 %v123, %v124
    %v126 = vrot.slane %v125, 1
    %v127 = vadd.f32 %v125, %v126
    %v128 = vmul.f32 %v127, 0.001953125
    %v129 = vsel %vm98, %v120, 0.0
    %v130 = vrot.slane %v129, 4
    %v131 = vadd.f32 %v129, %v130
    %v132 = vrot.slane %v131, 2
    %v133 = vadd.f32 %v131, %v132
    %v134 = vrot.slane %v133, 1
    %v135 = vadd.f32 %v133, %v134
    %v136 = vmul.f32 %v135, 0.001953125
    %v137 = vmul.f32 %v128, %v128
    %v138 = vsub.f32 %v136, %v137
    %s139 = sld [smem:[#allocation4]]
    %v140 = vadd.f32 %v138, 1e-05
    %v141 = vrsqrt.pop %v140
    %v142 = vstv %s139
    %v143 = vmul.f32 %v142, %v141
    %s144 = sld [smem:[#allocation5]]
    %v145 = vmul.f32 %v128, %v143
    %v146 = vstv %s144
    %v147 = vsub.f32 %v146, %v145
    %v148 = vmul.f32 %v86, %v143
    %v149 = vadd.f32 %v148, %v147
    %150 = vst [vmem:[#allocation2] sm:$0xf] %v149
    %v151 = vld [vmem:[#allocation2] sm:$0xf]
    %v154 = vunpack.c.l.s4 1983009808
    %v155 = vunpack.c.0.s8 %v154
    %v156 = vlaneseq
    %v157 = vshrl.u32 %v156, 7
    %v158 = vsub.s32 %v155, %v157
    %v159 = vrot.slane %v151, %v158
    %v160 = vcombine.high %v159, %v159
    %v163 = vpack.c.bf16 %v159, %v159
    %v164 = vpack.c.bf16 %v160, %v160
    %v165 = vld [vmem:[#allocation10] sm:$0xff]
    %v166 = vld [vmem:[#allocation10 + $0x8] sm:$0xff]
    %v167 = vld [vmem:[#allocation10 + $0x10] sm:$0xff]
    %v168 = vld [vmem:[#allocation10 + $0x18] sm:$0xff]
    %v169 = vld [vmem:[#allocation10 + $0x20] sm:$0xff]
    %v170 = vld [vmem:[#allocation10 + $0x28] sm:$0xff]
    %v171 = vld [vmem:[#allocation10 + $0x30] sm:$0xff]
    %v172 = vld [vmem:[#allocation10 + $0x38] sm:$0xff]
    %v173 = vld [vmem:[#allocation10 + $0x40] sm:$0xff]
    %v174 = vld [vmem:[#allocation10 + $0x48] sm:$0xff]
    %v175 = vld [vmem:[#allocation10 + $0x50] sm:$0xff]
    %v176 = vld [vmem:[#allocation10 + $0x58] sm:$0xff]
    %v177 = vld [vmem:[#allocation10 + $0x60] sm:$0xff]
    %v178 = vld [vmem:[#allocation10 + $0x68] sm:$0xff]
    %v179 = vld [vmem:[#allocation10 + $0x70] sm:$0xff]
    %v180 = vld [vmem:[#allocation10 + $0x78] sm:$0xff]
    %v181 = vld [vmem:[#allocation10 + $0x80] sm:$0xff]
    %v182 = vld [vmem:[#allocation10 + $0x88] sm:$0xff]
    %v183 = vld [vmem:[#allocation10 + $0x90] sm:$0xff]
    %v184 = vld [vmem:[#allocation10 + $0x98] sm:$0xff]
    %v185 = vld [vmem:[#allocation10 + $0xa0] sm:$0xff]
    %v186 = vld [vmem:[#allocation10 + $0xa8] sm:$0xff]
    %v187 = vld [vmem:[#allocation10 + $0xb0] sm:$0xff]
    %v188 = vld [vmem:[#allocation10 + $0xb8] sm:$0xff]
    %v189 = vld [vmem:[#allocation10 + $0xc0] sm:$0xff]
    %v190 = vld [vmem:[#allocation10 + $0xc8] sm:$0xff]
    %v191 = vld [vmem:[#allocation10 + $0xd0] sm:$0xff]
    %v192 = vld [vmem:[#allocation10 + $0xd8] sm:$0xff]
    %v193 = vld [vmem:[#allocation10 + $0xe0] sm:$0xff]
    %v194 = vld [vmem:[#allocation10 + $0xe8] sm:$0xff]
    %v195 = vld [vmem:[#allocation10 + $0xf0] sm:$0xff]
    %v196 = vld [vmem:[#allocation10 + $0xf8] sm:$0xff]
    %v197 = vld [vmem:[%s6] sm:$0x3]
    %v199 = vlaneseq
    %v200 = vshrl.u32 %v199, 7
    %v201 = vsub.s32 0, %v200
    %v202 = vrot.slane %v197, %v201
    %v203 = vlaneseq
    %v204 = vshrl.u32 %v203, 7
    %v205 = vsub.s32 1, %v204
    %v206 = vrot.slane %v197, %v205
    %v241 = vunpack.c.l.b16 %v165
    %v242 = vunpack.c.h.b16 %v165
    %v243 = vunpack.c.l.b16 %v166
    %v244 = vunpack.c.h.b16 %v166
    %v245 = vunpack.c.l.b16 %v167
    %v246 = vunpack.c.h.b16 %v167
    %v247 = vunpack.c.l.b16 %v168
    %v248 = vunpack.c.h.b16 %v168
    %v249 = vunpack.c.l.b16 %v169
    %v250 = vunpack.c.h.b16 %v169
    %v251 = vunpack.c.l.b16 %v170
    %v252 = vunpack.c.h.b16 %v170
    %v253 = vunpack.c.l.b16 %v171
    %v254 = vunpack.c.h.b16 %v171
    %v255 = vunpack.c.l.b16 %v172
    %v256 = vunpack.c.h.b16 %v172
    %v257 = vunpack.c.l.b16 %v173
    %v258 = vunpack.c.h.b16 %v173
    %v259 = vunpack.c.l.b16 %v174
    %v260 = vunpack.c.h.b16 %v174
    %v261 = vunpack.c.l.b16 %v175
    %v262 = vunpack.c.h.b16 %v175
    %v263 = vunpack.c.l.b16 %v176
    %v264 = vunpack.c.h.b16 %v176
    %v265 = vunpack.c.l.b16 %v177
    %v266 = vunpack.c.h.b16 %v177
    %v267 = vunpack.c.l.b16 %v178
    %v268 = vunpack.c.h.b16 %v178
    %v269 = vunpack.c.l.b16 %v179
    %v270 = vunpack.c.h.b16 %v179
    %v271 = vunpack.c.l.b16 %v180
    %v272 = vunpack.c.h.b16 %v180
    %v273 = vunpack.c.l.b16 %v181
    %v274 = vunpack.c.h.b16 %v181
    %v275 = vunpack.c.l.b16 %v182
    %v276 = vunpack.c.h.b16 %v182
    %v277 = vunpack.c.l.b16 %v183
    %v278 = vunpack.c.h.b16 %v183
    %v279 = vunpack.c.l.b16 %v184
    %v280 = vunpack.c.h.b16 %v184
    %v281 = vunpack.c.l.b16 %v185
    %v282 = vunpack.c.h.b16 %v185
    %v283 = vunpack.c.l.b16 %v186
    %v284 = vunpack.c.h.b16 %v186
    %v285 = vunpack.c.l.b16 %v187
    %v286 = vunpack.c.h.b16 %v187
    %v287 = vunpack.c.l.b16 %v188
    %v288 = vunpack.c.h.b16 %v188
    %v289 = vunpack.c.l.b16 %v189
    %v290 = vunpack.c.h.b16 %v189
    %v291 = vunpack.c.l.b16 %v190
    %v292 = vunpack.c.h.b16 %v190
    %v293 = vunpack.c.l.b16 %v191
    %v294 = vunpack.c.h.b16 %v191
    %v295 = vunpack.c.l.b16 %v192
    %v296 = vunpack.c.h.b16 %v192
    %v297 = vunpack.c.l.b16 %v193
    %v298 = vunpack.c.h.b16 %v193
    %v299 = vunpack.c.l.b16 %v194
    %v300 = vunpack.c.h.b16 %v194
    %v301 = vunpack.c.l.b16 %v195
    %v302 = vunpack.c.h.b16 %v195
    %v303 = vunpack.c.l.b16 %v196
    %v304 = vunpack.c.h.b16 %v196
    %v305 = vpack.c.b16 %v243, %v241
    %v306 = vpack.c.b16 %v244, %v242
    %v307 = vpack.c.b16 %v247, %v245
    %v308 = vpack.c.b16 %v248, %v246
    %v309 = vpack.c.b16 %v251, %v249
    %v310 = vpack.c.b16 %v252, %v250
    %v311 = vpack.c.b16 %v255, %v253
    %v312 = vpack.c.b16 %v256, %v254
    %v313 = vpack.c.b16 %v259, %v257
    %v314 = vpack.c.b16 %v260, %v258
    %v315 = vpack.c.b16 %v263, %v261
    %v316 = vpack.c.b16 %v264, %v262
    %v317 = vpack.c.b16 %v267, %v265
    %v318 = vpack.c.b16 %v268, %v266
    %v319 = vpack.c.b16 %v271, %v269
    %v320 = vpack.c.b16 %v272, %v270
    %v321 = vpack.c.b16 %v275, %v273
    %v322 = vpack.c.b16 %v276, %v274
    %v323 = vpack.c.b16 %v279, %v277
    %v324 = vpack.c.b16 %v280, %v278
    %v325 = vpack.c.b16 %v283, %v281
    %v326 = vpack.c.b16 %v284, %v282
    %v327 = vpack.c.b16 %v287, %v285
    %v328 = vpack.c.b16 %v288, %v286
    %v329 = vpack.c.b16 %v291, %v289
    %v330 = vpack.c.b16 %v292, %v290
    %v331 = vpack.c.b16 %v295, %v293
    %v332 = vpack.c.b16 %v296, %v294
    %v333 = vpack.c.b16 %v299, %v297
    %v334 = vpack.c.b16 %v300, %v298
    %v335 = vpack.c.b16 %v303, %v301
    %v336 = vpack.c.b16 %v304, %v302
    %369 = vmatprep.subr.bf16.mxu0 %v306
    %370 = vmatpush1.bf16.msra.mxu0 %v305
    %371 = vmatprep.subr.bf16.mxu0 %v308
    %372 = vmatpush1.bf16.msra.mxu0 %v307
    %373 = vmatprep.subr.bf16.mxu0 %v310
    %374 = vmatpush1.bf16.msra.mxu0 %v309
    %375 = vmatprep.subr.bf16.mxu0 %v312
    %376 = vmatpush1.bf16.msra.mxu0 %v311
    %377 = vmatprep.subr.bf16.mxu0 %v314
    %378 = vmatpush1.bf16.msra.mxu0 %v313
    %379 = vmatprep.subr.bf16.mxu0 %v316
    %380 = vmatpush1.bf16.msra.mxu0 %v315
    %381 = vmatprep.subr.bf16.mxu0 %v318
    %382 = vmatpush1.bf16.msra.mxu0 %v317
    %383 = vmatprep.subr.bf16.mxu0 %v320
    %384 = vmatpush1.bf16.msra.mxu0 %v319
    %385 = vmatprep.subr.bf16.mxu0 %v322
    %386 = vmatpush1.bf16.msra.mxu0 %v321
    %387 = vmatprep.subr.bf16.mxu0 %v324
    %388 = vmatpush1.bf16.msra.mxu0 %v323
    %389 = vmatprep.subr.bf16.mxu0 %v326
    %390 = vmatpush1.bf16.msra.mxu0 %v325
    %391 = vmatprep.subr.bf16.mxu0 %v328
    %392 = vmatpush1.bf16.msra.mxu0 %v327
    %393 = vmatprep.subr.bf16.mxu0 %v330
    %394 = vmatpush1.bf16.msra.mxu0 %v329
    %395 = vmatprep.subr.bf16.mxu0 %v332
    %396 = vmatpush1.bf16.msra.mxu0 %v331
    %397 = vmatprep.subr.bf16.mxu0 %v334
    %398 = vmatpush1.bf16.msra.mxu0 %v333
    %399 = vmatprep.subr.bf16.mxu0 %v336
    %400 = vmatpush1.bf16.msra.mxu0 %v335
    %401 = vmatprep.mubr.bf16.mxu0 %v164
    %402 = vmatmul.mubr.bf16.gmra.mrb[0].mxu0 %v163
    %v403 = vpop.f32.mrb[0].mxu0
    %v404 = vadd.f32 %v202, %v403
    %v405 = vpop.f32.mrb[0].mxu0
    %v406 = vadd.f32 %v206, %v405
    %v407 = vpop.f32.mrb[0].mxu0
    %v408 = vpop.f32.mrb[0].mxu0
    %409 = vdwg.mxu0
    %v410 = vmax.f32 %v404, 0.0
    %v411 = vmax.f32 %v406, 0.0
    %v412 = vpack.c.bf16 %v410, %v410
    %v413 = vpack.c.bf16 %v411, %v411
    %v414 = vld [vmem:[%s7] sm:$0xf]
    %v415 = vld [vmem:[%s7 + $0x4] sm:$0xf]
    %v416 = vld [vmem:[%s7 + $0x8] sm:$0xf]
    %v417 = vld [vmem:[%s7 + $0xc] sm:$0xf]
    %v418 = vld [vmem:[%s7 + $0x10] sm:$0xf]
    %v419 = vld [vmem:[%s7 + $0x14] sm:$0xf]
    %v420 = vld [vmem:[%s7 + $0x18] sm:$0xf]
    %v421 = vld [vmem:[%s7 + $0x1c] sm:$0xf]
    %v422 = vld [vmem:[%s7 + $0x20] sm:$0xf]
    %v423 = vld [vmem:[%s7 + $0x24] sm:$0xf]
    %v424 = vld [vmem:[%s7 + $0x28] sm:$0xf]
    %v425 = vld [vmem:[%s7 + $0x2c] sm:$0xf]
    %v426 = vld [vmem:[%s7 + $0x30] sm:$0xf]
    %v427 = vld [vmem:[%s7 + $0x34] sm:$0xf]
    %v428 = vld [vmem:[%s7 + $0x38] sm:$0xf]
    %v429 = vld [vmem:[%s7 + $0x3c] sm:$0xf]
    %v430 = vld [vmem:[%s7 + $0x40] sm:$0xf]
    %v431 = vld [vmem:[%s7 + $0x44] sm:$0xf]
    %v432 = vld [vmem:[%s7 + $0x48] sm:$0xf]
    %v433 = vld [vmem:[%s7 + $0x4c] sm:$0xf]
    %v434 = vld [vmem:[%s7 + $0x50] sm:$0xf]
    %v435 = vld [vmem:[%s7 + $0x54] sm:$0xf]
    %v436 = vld [vmem:[%s7 + $0x58] sm:$0xf]
    %v437 = vld [vmem:[%s7 + $0x5c] sm:$0xf]
    %v438 = vld [vmem:[%s7 + $0x60] sm:$0xf]
    %v439 = vld [vmem:[%s7 + $0x64] sm:$0xf]
    %v440 = vld [vmem:[%s7 + $0x68] sm:$0xf]
    %v441 = vld [vmem:[%s7 + $0x6c] sm:$0xf]
    %v442 = vld [vmem:[%s7 + $0x70] sm:$0xf]
    %v443 = vld [vmem:[%s7 + $0x74] sm:$0xf]
    %v444 = vld [vmem:[%s7 + $0x78] sm:$0xf]
    %v445 = vld [vmem:[%s7 + $0x7c] sm:$0xf]
    %v446 = vld [vmem:[%s8] sm:$0x1]
    %v448 = vlaneseq
    %v449 = vshrl.u32 %v448, 7
    %v450 = vsub.s32 0, %v449
    %v451 = vrot.slane %v446, %v450
    %v485 = vunpack.c.l.b16 %v414
    %v486 = vunpack.c.l.b16 %v415
    %v487 = vunpack.c.l.b16 %v416
    %v488 = vunpack.c.l.b16 %v417
    %v489 = vunpack.c.l.b16 %v418
    %v490 = vunpack.c.l.b16 %v419
    %v491 = vunpack.c.l.b16 %v420
    %v492 = vunpack.c.l.b16 %v421
    %v493 = vunpack.c.l.b16 %v422
    %v494 = vunpack.c.l.b16 %v423
    %v495 = vunpack.c.l.b16 %v424
    %v496 = vunpack.c.l.b16 %v425
    %v497 = vunpack.c.l.b16 %v426
    %v498 = vunpack.c.l.b16 %v427
    %v499 = vunpack.c.l.b16 %v428
    %v500 = vunpack.c.l.b16 %v429
    %v501 = vunpack.c.l.b16 %v430
    %v502 = vunpack.c.l.b16 %v431
    %v503 = vunpack.c.l.b16 %v432
    %v504 = vunpack.c.l.b16 %v433
    %v505 = vunpack.c.l.b16 %v434
    %v506 = vunpack.c.l.b16 %v435
    %v507 = vunpack.c.l.b16 %v436
    %v508 = vunpack.c.l.b16 %v437
    %v509 = vunpack.c.l.b16 %v438
    %v510 = vunpack.c.l.b16 %v439
    %v511 = vunpack.c.l.b16 %v440
    %v512 = vunpack.c.l.b16 %v441
    %v513 = vunpack.c.l.b16 %v442
    %v514 = vunpack.c.l.b16 %v443
    %v515 = vunpack.c.l.b16 %v444
    %v516 = vunpack.c.l.b16 %v445
    %v517 = vpack.c.b16 %v486, %v485
    %v518 = vpack.c.b16 %v488, %v487
    %v519 = vpack.c.b16 %v490, %v489
    %v520 = vpack.c.b16 %v492, %v491
    %v521 = vpack.c.b16 %v494, %v493
    %v522 = vpack.c.b16 %v496, %v495
    %v523 = vpack.c.b16 %v498, %v497
    %v524 = vpack.c.b16 %v500, %v499
    %v525 = vpack.c.b16 %v502, %v501
    %v526 = vpack.c.b16 %v504, %v503
    %v527 = vpack.c.b16 %v506, %v505
    %v528 = vpack.c.b16 %v508, %v507
    %v529 = vpack.c.b16 %v510, %v509
    %v530 = vpack.c.b16 %v512, %v511
    %v531 = vpack.c.b16 %v514, %v513
    %v532 = vpack.c.b16 %v516, %v515
    %549 = vmatprep.subr.bf16.mxu0 0
    %550 = vmatpush1.bf16.msra.mxu0 %v517
    %551 = vmatprep.subr.bf16.mxu0 0
    %552 = vmatpush1.bf16.msra.mxu0 %v518
    %553 = vmatprep.subr.bf16.mxu0 0
    %554 = vmatpush1.bf16.msra.mxu0 %v519
    %555 = vmatprep.subr.bf16.mxu0 0
    %556 = vmatpush1.bf16.msra.mxu0 %v520
    %557 = vmatprep.subr.bf16.mxu0 0
    %558 = vmatpush1.bf16.msra.mxu0 %v521
    %559 = vmatprep.subr.bf16.mxu0 0
    %560 = vmatpush1.bf16.msra.mxu0 %v522
    %561 = vmatprep.subr.bf16.mxu0 0
    %562 = vmatpush1.bf16.msra.mxu0 %v523
    %563 = vmatprep.subr.bf16.mxu0 0
    %564 = vmatpush1.bf16.msra.mxu0 %v524
    %565 = vmatprep.subr.bf16.mxu0 0
    %566 = vmatpush1.bf16.msra.mxu0 %v525
    %567 = vmatprep.subr.bf16.mxu0 0
    %568 = vmatpush1.bf16.msra.mxu0 %v526
    %569 = vmatprep.subr.bf16.mxu0 0
    %570 = vmatpush1.bf16.msra.mxu0 %v527
    %571 = vmatprep.subr.bf16.mxu0 0
    %572 = vmatpush1.bf16.msra.mxu0 %v528
    %573 = vmatprep.subr.bf16.mxu0 0
    %574 = vmatpush1.bf16.msra.mxu0 %v529
    %575 = vmatprep.subr.bf16.mxu0 0
    %576 = vmatpush1.bf16.msra.mxu0 %v530
    %577 = vmatprep.subr.bf16.mxu0 0
    %578 = vmatpush1.bf16.msra.mxu0 %v531
    %579 = vmatprep.subr.bf16.mxu0 0
    %580 = vmatpush1.bf16.msra.mxu0 %v532
    %581 = vmatprep.mubr.bf16.mxu0 %v413
    %582 = vmatmul.mubr.bf16.gmra.mrb[0].mxu0 %v412
    %v583 = vpop.f32.mrb[0].mxu0
    %v584 = vadd.f32 %v451, %v583
    %v585 = vpop.f32.mrb[0].mxu0
    %v586 = vpop.f32.mrb[0].mxu0
    %v587 = vpop.f32.mrb[0].mxu0
    %588 = vdwg.mxu0
    %589 = vst [vmem:[#allocation11] sm:$0x3] %v584
    // Predicated region
    $region46: #{reward_predictor_forward.1} parent=1 // pred_check
      _
    $region47: #{reward_predictor_forward.1} parent=1 // pred_check_branch
      %591 = sbr.rel (0) target = $region49
    $region48: #{reward_predictor_forward.1} parent=1 // pred_region
      %s593 = ssub.s32 32, 32
      %594 = vsyncadd [#allocation8], %s593
      %s596 = sshll.u32 [#allocation11], 4
      %s597 = int_to_ptr.vmem [resolvable:$true] %s596
      %599 = dma.vmem_to_hbm [thread:$0]  %s597, 32, %s9, [#allocation8]
    $region49: #{reward_predictor_forward.1} parent=1 // pred_fallthru
      _
    // Predicated region
    $region50: #{reward_predictor_forward.1} parent=1 // pred_check
      _
    $region51: #{reward_predictor_forward.1} parent=1 // pred_check_branch
      %601 = sbr.rel (0) target = $region53
    $region52: #{reward_predictor_forward.1} parent=1 // pred_region
      %602 = dma.done [#allocation8], 32
    $region53: #{reward_predictor_forward.1} parent=1 // pred_fallthru
      _
    %603 = vsyncpa [#allocation7], 1
    %604 = vsyncpa [#allocation8], 1
    %605 = vsyncpa [#allocation9], 1

</llo_original>
